<compile_context>
chip_gen: v7x
topology: tpu7x:2x2x1
jax: 0.10.0
libtpu: 0.0.40
codegen_flags: <defaults>
</compile_context>

<pallas_src>
import functools

import jax
import jax.numpy as jnp
import numpy as np
from jax.experimental import pallas as pl
from jax.experimental.pallas import tpu as pltpu


def _round_up(x, m):
    return ((x + m - 1) // m) * m


def _cdiv(a, b):
    return (a + b - 1) // b


def _out_size(n, s):
    # Truncation semantics (matches int(n * s)); tiny eps guards float error
    # like 0.3*10 -> 2.999... (review correctness concern).
    return int(n * s + 1e-6)


def _vmem_limit_bytes():
    """Chip-aware scoped-VMEM request (~75% of physical, capped)."""
    try:
        cap = int(pltpu.get_tpu_info().vmem_capacity_bytes)
    except Exception:                      # no info available -> assume v7x-like 64 MiB
        cap = 64 * 1024 * 1024
    return int(min(cap * 3 // 4, 100 * 1024 * 1024))


# ----------------------------------------------------------------------------
# Combined (fft -> fftshift -> crop -> ifftshift -> ifft) operator for one axis.
# ----------------------------------------------------------------------------
def _spectral_pool_matrix(n: int, n_out: int):
    """(real, imag) float64 parts of the (n_out, n) operator M such that
    y = M @ x equals ifft(ifftshift(center_crop(fftshift(fft(x)))))."""
    start = (n - n_out) // 2
    t = np.arange(n_out)
    c = (t + n_out // 2) % n_out          # ifftshift read index into the crop
    s = start + c                         # index in the fftshift'd spectrum
    orig = (s - n // 2) % n               # index in the un-shifted spectrum
    m = np.arange(n)
    A = np.exp(-2j * np.pi * orig[:, None] * m[None, :] / n)           # (n_out, n)
    p = np.arange(n_out)
    B = np.exp(2j * np.pi * p[:, None] * t[None, :] / n_out) / n_out   # (n_out, n_out)
    M = B @ A
    return np.real(M), np.imag(M)


# ----------------------------------------------------------------------------
# Kernel 1: Kronecker / single-matmul path (small images, batched tiles).
# ----------------------------------------------------------------------------
def _kron_kernel(x_ref, kt_ref, o_ref):
    # x_ref: (tb, H*W), kt_ref: (H*W, HoWo_pad), o_ref: (tb, HoWo_pad)
    o_ref[...] = jnp.dot(
        x_ref[...], kt_ref[...], preferred_element_type=jnp.float32
    ).astype(o_ref.dtype)


# ----------------------------------------------------------------------------
# Kernel 2: separable path (large images), TB images per grid step.
# ----------------------------------------------------------------------------
def _sep_kernel(x_ref, mhr_ref, mhi_ref, mwrt_ref, mwit_ref, o_ref):
    tb = x_ref.shape[0]
    for b in range(tb):                    # static unroll; tb is small (<= 8)
        xb = x_ref[b]                      # (H, W)
        tr = jnp.dot(mhr_ref[...], xb, preferred_element_type=jnp.float32)  # (Ho, W)
        ti = jnp.dot(mhi_ref[...], xb, preferred_element_type=jnp.float32)
        o_ref[b] = (
            jnp.dot(tr, mwrt_ref[...], preferred_element_type=jnp.float32)
            - jnp.dot(ti, mwit_ref[...], preferred_element_type=jnp.float32)
        ).astype(o_ref.dtype)


# ----------------------------------------------------------------------------
# Wrapper.
# ----------------------------------------------------------------------------
@functools.partial(jax.jit, static_argnames=("scale_factor",))
def spectral_pool2d(x, scale_factor=(0.5, 0.5)):
    """x: (N, C, H, W) -> (N, C, Ho, Wo) float32."""
    if isinstance(scale_factor, (int, float)):
        scale_factor = (scale_factor, scale_factor)
    sh, sw = scale_factor
    N, C, H, W = x.shape
    Ho, Wo = _out_size(H, sh), _out_size(W, sw)
    NC, HW, HoWo = N * C, H * W, Ho * Wo

    mhr, mhi = _spectral_pool_matrix(H, Ho)      # (Ho, H)
    mwr, mwi = _spectral_pool_matrix(W, Wo)      # (Wo, W)

    xf = x.astype(jnp.float32)

    vmem_limit = _vmem_limit_bytes()
    budget = vmem_limit - 2 * 1024 * 1024        # headroom for compiler scratch

    # ---- decide path ---------------------------------------------------------
    use_kron = HW <= 4096
    if use_kron:
        HoWo_pad = _round_up(HoWo, 128)          # lane-dense output stores
        kt_bytes = HW * HoWo_pad * 4
        per_row = 4 * (HW + HoWo_pad)            # one f32 input row + output row
        # Conservatively budget two copies of the constant (even though the
        # whole-array VMEM spec below keeps a single resident copy).
        tb_cap = (budget - 2 * kt_bytes) // (2 * per_row)
        if tb_cap < min(NC, 128):
            use_kron = False                     # guard the tb-collapse cliff

    if use_kron:
        # ---- single-matmul (Kronecker) path ----------------------------------
        K = np.kron(mhr, mwr) - np.kron(mhi, mwi)          # (HoWo, HW) float64
        if HoWo_pad != HoWo:                               # pad output columns -> 128-wide
            K = np.concatenate([K, np.zeros((HoWo_pad - HoWo, HW))], axis=0)
        KT = jnp.asarray(K.T, dtype=jnp.float32)           # (HW, HoWo_pad)

        tb = int(min(tb_cap, 512, _round_up(NC, 8)))
        # v7x megacore: keep >=2 grid steps when the batch is large enough.
        tb = min(tb, max(128, _round_up(_cdiv(NC, 2), 8)))
        if tb >= NC:
            tb = NC                                        # full-batch block (always legal)
        elif tb >= 128:
            tb = (tb // 128) * 128                         # v5e: 128-aligned MXU M tiles
        else:
            tb = max(8, (tb // 8) * 8)

        xflat = xf.reshape(NC, HW)        # no batch padding: ragged last block is masked
        out_flat = pl.pallas_call(
            _kron_kernel,
            out_shape=jax.ShapeDtypeStruct((NC, HoWo_pad), jnp.float32),
            grid=(pl.cdiv(NC, tb),),
            in_specs=[
                pl.BlockSpec((tb, HW), lambda i: (i, 0)),
                # constant matrix: whole-array VMEM resident (not pipelined)
                pl.BlockSpec(memory_space=pltpu.MemorySpace.VMEM),
            ],
            out_specs=pl.BlockSpec((tb, HoWo_pad), lambda i: (i, 0)),
            compiler_params=pltpu.CompilerParams(
                dimension_semantics=("parallel",),
                vmem_limit_bytes=vmem_limit),
        )(xflat, KT)
        # Cheap column slice of the (small, pooled) output restores HoWo.
        return out_flat[:, :HoWo].reshape(N, C, Ho, Wo)

    # ---- separable path (large spatial sizes) --------------------------------
    mhr_j = jnp.asarray(mhr, dtype=jnp.float32)            # (Ho, H)
    mhi_j = jnp.asarray(mhi, dtype=jnp.float32)            # (Ho, H)
    mwrT = jnp.asarray(mwr.T, dtype=jnp.float32)           # (W, Wo)
    mwiT = jnp.asarray(mwi.T, dtype=jnp.float32)           # (W, Wo)

    const_bytes = 4 * 2 * (Ho * H + W * Wo)
    # double-buffered in/out tiles + the two (Ho, W) f32 temporaries per image
    per_img = 4 * (2 * HW + 2 * HoWo + 2 * Ho * W)
    tb = int(max(1, min(8, (budget - 2 * const_bytes) // per_img, NC)))

    xi = xf.reshape(NC, H, W)
    out = pl.pallas_call(
        _sep_kernel,
        out_shape=jax.ShapeDtypeStruct((NC, Ho, Wo), jnp.float32),
        grid=(pl.cdiv(NC, tb),),
        in_specs=[
            pl.BlockSpec((tb, H, W), lambda i: (i, 0, 0)),
            pl.BlockSpec(memory_space=pltpu.MemorySpace.VMEM),   # Mh_r
            pl.BlockSpec(memory_space=pltpu.MemorySpace.VMEM),   # Mh_i
            pl.BlockSpec(memory_space=pltpu.MemorySpace.VMEM),   # Mw_r^T
            pl.BlockSpec(memory_space=pltpu.MemorySpace.VMEM),   # Mw_i^T
        ],
        out_specs=pl.BlockSpec((tb, Ho, Wo), lambda i: (i, 0, 0)),
        compiler_params=pltpu.CompilerParams(
            dimension_semantics=("parallel",),
            vmem_limit_bytes=vmem_limit),
    )(xi, mhr_j, mhi_j, mwrT, mwiT)
    return out.reshape(N, C, Ho, Wo)


# ----------------------------------------------------------------------------
# Pure-JAX reference (fft2 -> fftshift -> crop -> ifftshift -> ifft2 -> real).
# ----------------------------------------------------------------------------
def _reference_spectral_pool2d(x, scale_factor=(0.5, 0.5)):
    sh, sw = scale_factor
    H, W = x.shape[-2:]
    Ho, Wo = _out_size(H, sh), _out_size(W, sw)
    f = jnp.fft.fft2(x)
    f = jnp.fft.fftshift(f, axes=(-2, -1))
    hs, ws = (H - Ho) // 2, (W - Wo) // 2
    f = f[..., hs:hs + Ho, ws:ws + Wo]
    f = jnp.fft.ifftshift(f, axes=(-2, -1))
    return jnp.real(jnp.fft.ifft2(f)).astype(jnp.float32)


if __name__ == "__main__":
    key = jax.random.PRNGKey(0)
    x = jax.random.normal(key, (2, 4, 16, 16), dtype=jnp.float32)

    scale_factor = (0.5, 0.5)            # SpectralPool2d(scale_factor=0.5)
    y = spectral_pool2d(x, scale_factor=scale_factor)
    y = jax.block_until_ready(y)

    y_ref = _reference_spectral_pool2d(x, scale_factor)
    assert y.shape == (2, 4, 8, 8), y.shape
    err = float(jnp.max(jnp.abs(y - y_ref)))
    assert err < 1e-3, err

    print("KERNEL_OK")
</pallas_src>

<mosaic_0001>
module attributes {stable_mosaic.version = 11 : i64} {
  func.func @_kron_kernel(%arg0: i32, %arg1: memref<8x256xf32, #tpu.memory_space<vmem>>, %arg2: memref<256x128xf32, #tpu.memory_space<vmem>>, %arg3: memref<8x128xf32, #tpu.memory_space<vmem>>) attributes {dimension_semantics = [#tpu.dimension_semantics<parallel>], iteration_bounds = array<i64: 1>, scalar_prefetch = 0 : i64, scratch_operands = 0 : i64, tpu.core_type = #tpu.core_type<tc>, window_params = [{transform_indices = @transform_0, window_bounds = array<i64: 8, 256>}, {pipeline_mode = #tpu.pipeline_mode<synchronous>, transform_indices = @transform_1, window_bounds = array<i64: 256, 128>}, {transform_indices = @transform_2, window_bounds = array<i64: 8, 128>}]} {
    %c0 = arith.constant 0 : index
    %c0_0 = arith.constant 0 : index
    %0 = vector.load %arg1[%c0, %c0_0] : memref<8x256xf32, #tpu.memory_space<vmem>>, vector<8x256xf32>
    %c0_1 = arith.constant 0 : index
    %c0_2 = arith.constant 0 : index
    %1 = vector.load %arg2[%c0_1, %c0_2] : memref<256x128xf32, #tpu.memory_space<vmem>>, vector<256x128xf32>
    %cst = arith.constant dense<0.000000e+00> : vector<8x128xf32>
    %2 = tpu.matmul %0, %1, %cst {dimension_numbers = #tpu.dot_dimension_numbers<[1], [0], [0], [1], [0, 0, 1, 1], [], []>} : vector<8x256xf32>, vector<256x128xf32>, vector<8x128xf32> -> vector<8x128xf32>
    %c0_3 = arith.constant 0 : index
    %c0_4 = arith.constant 0 : index
    %3 = vector.load %arg3[%c0_3, %c0_4] : memref<8x128xf32, #tpu.memory_space<vmem>>, vector<8x128xf32>
    tpu.vector_store %arg3[%c0_3, %c0_4], %2 {strides = array<i32>} : memref<8x128xf32, #tpu.memory_space<vmem>>, vector<8x128xf32>,
    return
  }
  func.func @transform_0(%arg0: i32) -> (i32, i32) {
    %c0_i32 = arith.constant 0 : i32
    %c0_i32_0 = arith.constant 0 : i32
    return %arg0, %c0_i32 : i32, i32
  }
  func.func @transform_1(%arg0: i32) -> (i32, i32) {
    %c0_i32 = arith.constant 0 : i32
    %c0_i32_0 = arith.constant 0 : i32
    %c0_i32_1 = arith.constant 0 : i32
    return %c0_i32, %c0_i32_0 : i32, i32
  }
  func.func @transform_2(%arg0: i32) -> (i32, i32) {
    %c0_i32 = arith.constant 0 : i32
    %c0_i32_0 = arith.constant 0 : i32
    return %arg0, %c0_i32 : i32, i32
  }
}

</mosaic_0001>

<llo_original>
// kernel: spectral_pool2d.1
$region0: #{spectral_pool2d.1}
  #allocation0 [shape = 'u32[]', space=smem, size = 0x4, offset = 0x4, fixed_abs, tag = 'smem constant byte address 0x4 - core index']
  #allocation1 [shape = 'u32[144,128]{1,0:T(1,128)}', space=vmem, size = 0x12000, scoped, tag = 'internal scratch']
  %s0 = inlined_call_operand.vmem [shape: f32[8,256], index: 0, kind: input, shape index: {}]
  %s1 = inlined_call_operand.hbm [shape: f32[256,128], index: 1, kind: input, shape index: {}]
  %s2 = inlined_call_operand.vmem [shape: f32[8,128], index: 2, kind: output, shape index: {}]
  %s3 = sld [smem:[#allocation0]]
  $region22: #{spectral_pool2d.1} parent=0
    _
  %s5 = ssub.s32 1, %s3
  %s6 = scalar_select 0, %s5, %s3
  $region1: #{spectral_pool2d.1} parent=0
    #allocation2 [shape = 'u8[131072]{0}', space=vmem, size = 0x20000, scoped, tag = 'input window, operand 1, single buffered']
    #allocation3 [shape = 's32[1]{0}', space=sflag, size = 0x4, scoped, tag = 'scoped memory for spectral_pool2d.1']
    %7 = vsyncpa [#allocation3], 0
    // Predicated region
    $region2: #{spectral_pool2d.1} parent=1 // pred_check
      _
    $region3: #{spectral_pool2d.1} parent=1 // pred_check_branch
      %9 = sbr.rel (0) target = $region5
    $region4: #{spectral_pool2d.1} parent=1 // pred_region
      _
    $region5: #{spectral_pool2d.1} parent=1 // pred_fallthru
      _
    // Predicated region
    $region6: #{spectral_pool2d.1} parent=1 // pred_check
      _
    $region7: #{spectral_pool2d.1} parent=1 // pred_check_branch
      %11 = sbr.rel (0) target = $region9
    $region8: #{spectral_pool2d.1} parent=1 // pred_region
      %s13 = ssub.s32 4096, 4096
      %14 = vsyncadd [#allocation3], %s13
      %s15 = sshll.u32 [#allocation2], 4
      %s16 = int_to_ptr.vmem [resolvable:$true] %s15
      %21 = dma.hbm_to_vmem [thread:$0]  %s1, 4096, %s16, [#allocation3], 128, 128, 8
    $region9: #{spectral_pool2d.1} parent=1 // pred_fallthru
      _
    // Predicated region
    $region10: #{spectral_pool2d.1} parent=1 // pred_check
      _
    $region11: #{spectral_pool2d.1} parent=1 // pred_check_branch
      %23 = sbr.rel (0) target = $region13
    $region12: #{spectral_pool2d.1} parent=1 // pred_region
      %24 = dma.done [#allocation3], 4096
    $region13: #{spectral_pool2d.1} parent=1 // pred_fallthru
      _
    %v25 = vld [vmem:[%s0] sm:$0xff]
    %v26 = vld [vmem:[%s0 + $0x8] sm:$0xff]
    %v27 = vld [vmem:[#allocation2] sm:$0xff]
    %v28 = vld [vmem:[#allocation2 + $0x8] sm:$0xff]
    %v29 = vld [vmem:[#allocation2 + $0x10] sm:$0xff]
    %v30 = vld [vmem:[#allocation2 + $0x18] sm:$0xff]
    %v31 = vld [vmem:[#allocation2 + $0x20] sm:$0xff]
    %v32 = vld [vmem:[#allocation2 + $0x28] sm:$0xff]
    %v33 = vld [vmem:[#allocation2 + $0x30] sm:$0xff]
    %v34 = vld [vmem:[#allocation2 + $0x38] sm:$0xff]
    %v35 = vld [vmem:[#allocation2 + $0x40] sm:$0xff]
    %v36 = vld [vmem:[#allocation2 + $0x48] sm:$0xff]
    %v37 = vld [vmem:[#allocation2 + $0x50] sm:$0xff]
    %v38 = vld [vmem:[#allocation2 + $0x58] sm:$0xff]
    %v39 = vld [vmem:[#allocation2 + $0x60] sm:$0xff]
    %v40 = vld [vmem:[#allocation2 + $0x68] sm:$0xff]
    %v41 = vld [vmem:[#allocation2 + $0x70] sm:$0xff]
    %v42 = vld [vmem:[#allocation2 + $0x78] sm:$0xff]
    %v43 = vld [vmem:[#allocation2 + $0x80] sm:$0xff]
    %v44 = vld [vmem:[#allocation2 + $0x88] sm:$0xff]
    %v45 = vld [vmem:[#allocation2 + $0x90] sm:$0xff]
    %v46 = vld [vmem:[#allocation2 + $0x98] sm:$0xff]
    %v47 = vld [vmem:[#allocation2 + $0xa0] sm:$0xff]
    %v48 = vld [vmem:[#allocation2 + $0xa8] sm:$0xff]
    %v49 = vld [vmem:[#allocation2 + $0xb0] sm:$0xff]
    %v50 = vld [vmem:[#allocation2 + $0xb8] sm:$0xff]
    %v51 = vld [vmem:[#allocation2 + $0xc0] sm:$0xff]
    %v52 = vld [vmem:[#allocation2 + $0xc8] sm:$0xff]
    %v53 = vld [vmem:[#allocation2 + $0xd0] sm:$0xff]
    %v54 = vld [vmem:[#allocation2 + $0xd8] sm:$0xff]
    %v55 = vld [vmem:[#allocation2 + $0xe0] sm:$0xff]
    %v56 = vld [vmem:[#allocation2 + $0xe8] sm:$0xff]
    %v57 = vld [vmem:[#allocation2 + $0xf0] sm:$0xff]
    %v58 = vld [vmem:[#allocation2 + $0xf8] sm:$0xff]
    %59 = vmatprep.subr.mxu0 0.0
    %60 = vmatpush1.msra.mxu0 %v27
    %61 = vmatprep.subr.mxu0 0.0
    %62 = vmatpush1.msra.mxu0 %v28
    %63 = vmatprep.subr.mxu0 0.0
    %64 = vmatpush1.msra.mxu0 %v29
    %65 = vmatprep.subr.mxu0 0.0
    %66 = vmatpush1.msra.mxu0 %v30
    %67 = vmatprep.subr.mxu0 0.0
    %68 = vmatpush1.msra.mxu0 %v31
    %69 = vmatprep.subr.mxu0 0.0
    %70 = vmatpush1.msra.mxu0 %v32
    %71 = vmatprep.subr.mxu0 0.0
    %72 = vmatpush1.msra.mxu0 %v33
    %73 = vmatprep.subr.mxu0 0.0
    %74 = vmatpush1.msra.mxu0 %v34
    %75 = vmatprep.subr.mxu0 0.0
    %76 = vmatpush1.msra.mxu0 %v35
    %77 = vmatprep.subr.mxu0 0.0
    %78 = vmatpush1.msra.mxu0 %v36
    %79 = vmatprep.subr.mxu0 0.0
    %80 = vmatpush1.msra.mxu0 %v37
    %81 = vmatprep.subr.mxu0 0.0
    %82 = vmatpush1.msra.mxu0 %v38
    %83 = vmatprep.subr.mxu0 0.0
    %84 = vmatpush1.msra.mxu0 %v39
    %85 = vmatprep.subr.mxu0 0.0
    %86 = vmatpush1.msra.mxu0 %v40
    %87 = vmatprep.subr.mxu0 0.0
    %88 = vmatpush1.msra.mxu0 %v41
    %89 = vmatprep.subr.mxu0 0.0
    %90 = vmatpush1.msra.mxu0 %v42
    %91 = vmatprep.subr.mxu0 0.0
    %92 = vmatpush1.msra.mxu0 %v43
    %93 = vmatprep.subr.mxu0 0.0
    %94 = vmatpush1.msra.mxu0 %v44
    %95 = vmatprep.subr.mxu0 0.0
    %96 = vmatpush1.msra.mxu0 %v45
    %97 = vmatprep.subr.mxu0 0.0
    %98 = vmatpush1.msra.mxu0 %v46
    %99 = vmatprep.subr.mxu0 0.0
    %100 = vmatpush1.msra.mxu0 %v47
    %101 = vmatprep.subr.mxu0 0.0
    %102 = vmatpush1.msra.mxu0 %v48
    %103 = vmatprep.subr.mxu0 0.0
    %104 = vmatpush1.msra.mxu0 %v49
    %105 = vmatprep.subr.mxu0 0.0
    %106 = vmatpush1.msra.mxu0 %v50
    %107 = vmatprep.subr.mxu0 0.0
    %108 = vmatpush1.msra.mxu0 %v51
    %109 = vmatprep.subr.mxu0 0.0
    %110 = vmatpush1.msra.mxu0 %v52
    %111 = vmatprep.subr.mxu0 0.0
    %112 = vmatpush1.msra.mxu0 %v53
    %113 = vmatprep.subr.mxu0 0.0
    %114 = vmatpush1.msra.mxu0 %v54
    %115 = vmatprep.subr.mxu0 0.0
    %116 = vmatpush1.msra.mxu0 %v55
    %117 = vmatprep.subr.mxu0 0.0
    %118 = vmatpush1.msra.mxu0 %v56
    %119 = vmatprep.subr.mxu0 0.0
    %120 = vmatpush1.msra.mxu0 %v57
    %121 = vmatprep.subr.mxu0 0.0
    %122 = vmatpush1.msra.mxu0 %v58
    %123 = vmatprep.mubr.f32.mxu0 %v26
    %124 = vmatmul.mubr.f32.gmra.mrb[0].mxu0 %v25
    %v125 = vpop.f32.mrb[0].mxu0
    %v126 = vadd.f32 0.0, %v125
    %v127 = vpop.f32.mrb[0].mxu0
    %128 = vdwg.mxu0
    %129 = vst [vmem:[%s2] sm:$0xff] %v126
    // Predicated region
    $region14: #{spectral_pool2d.1} parent=1 // pred_check
      _
    $region15: #{spectral_pool2d.1} parent=1 // pred_check_branch
      %131 = sbr.rel (0) target = $region17
    $region16: #{spectral_pool2d.1} parent=1 // pred_region
      _
    $region17: #{spectral_pool2d.1} parent=1 // pred_fallthru
      _
    // Predicated region
    $region18: #{spectral_pool2d.1} parent=1 // pred_check
      _
    $region19: #{spectral_pool2d.1} parent=1 // pred_check_branch
      %133 = sbr.rel (0) target = $region21
    $region20: #{spectral_pool2d.1} parent=1 // pred_region
      _
    $region21: #{spectral_pool2d.1} parent=1 // pred_fallthru
      _
    %134 = vsyncpa [#allocation3], 1

</llo_original>
